<compile_context>
chip_gen: v5e
topology: v5e:2x2
jax: 0.10.0
libtpu: 0.0.40
codegen_flags: <defaults>
</compile_context>

<pallas_src>
import functools

import jax
import jax.numpy as jnp
from jax.experimental import pallas as pl
from jax.experimental.pallas import tpu as pltpu

BN_EPS = 1e-5
OUT_DIM = 128


def _pooler_head_kernel(x_ref, w1_ref, gamma_ref, beta_ref, w2_ref,
                        o_ref, acc_ref, *, tk):
    """Grid = (hdim chunk j [parallel], K tile k [arbitrary/reduction]).

    x_ref:     [B, pn_pad]      resident, sliced per K step
    w1_ref:    [tk, hdim_c]     streamed K tile of the j-th hdim chunk
    gamma_ref: [1, hdim_c]      BatchNorm affine (j-th chunk)
    beta_ref:  [1, hdim_c]
    w2_ref:    [hdim_c, 128]    second Linear rows for the j-th chunk
    o_ref:     [B, 128]         partial output for chunk j (b2 added in wrapper)
    acc_ref:   [B, hdim_c] f32  scratch accumulator, resident across k
    """
    k = pl.program_id(1)

    @pl.when(k == 0)
    def _init():
        acc_ref[...] = jnp.zeros_like(acc_ref)

    start = pl.multiple_of(k * tk, 128)
    x = x_ref[:, pl.ds(start, tk)]
    w1 = w1_ref[...]
    if x.dtype != w1.dtype:          # bf16-weight path: feed MXU bf16 x bf16
        x = x.astype(w1.dtype)
    acc_ref[...] += jnp.dot(x, w1, preferred_element_type=jnp.float32)

    @pl.when(k == pl.num_programs(1) - 1)
    def _finalize():
        h = acc_ref[...]
        # BatchNorm1d, training-mode semantics (batch mean, biased variance).
        # Note: the Linear-1 bias is omitted -- it cancels exactly here.
        mean = jnp.mean(h, axis=0, keepdims=True)
        centered = h - mean
        var = jnp.mean(centered * centered, axis=0, keepdims=True)
        h = centered * jax.lax.rsqrt(var + BN_EPS)
        h = h * gamma_ref[...].astype(jnp.float32) + beta_ref[...].astype(jnp.float32)
        h = jnp.maximum(h, 0.0)                               # ReLU
        w2 = w2_ref[...]
        if w2.dtype != h.dtype:
            h = h.astype(w2.dtype)
        o_ref[...] = jnp.dot(h, w2,
                             preferred_element_type=jnp.float32).astype(o_ref.dtype)


def _round_down_128(v):
    return max(128, (int(v) // 128) * 128)


def _vmem_capacity_bytes():
    try:
        return int(pltpu.get_tpu_info().vmem_capacity_bytes)
    except Exception:
        return 64 << 20          # v7x-safe fallback


def _block_spec(block_shape, index_map, *, buffer_count=None):
    """BlockSpec with optional pipeline depth; falls back if kwarg unsupported."""
    if buffer_count is not None:
        try:
            return pl.BlockSpec(block_shape, index_map,
                                pipeline_mode=pl.Buffered(buffer_count))
        except Exception:
            pass
    return pl.BlockSpec(block_shape, index_map)


def _choose_tk(pn, hdim_c, w_itemsize, vmem_cap, resident_bytes,
               target_tile_bytes=6 << 20, nbuf=2):
    """K-tile (multiple of 128) sized from a per-tile byte budget + VMEM cap."""
    pn_up = ((pn + 127) // 128) * 128
    bytes_per_k = max(hdim_c * w_itemsize, 1)
    tk_target = _round_down_128(target_tile_bytes // bytes_per_k)
    w1_budget = max(vmem_cap - resident_bytes, 2 << 20)
    tk_vmem = _round_down_128(w1_budget // (nbuf * bytes_per_k))
    return int(min(pn_up, tk_target, tk_vmem))


def pooler_head_forward(x, params, *, tk=None):
    """x: [B, seq_len, d_model] float32 -> [B, 128] float32."""
    B, seq_len, d_model = x.shape
    pn = seq_len * d_model
    hdim = pn // 2
    dim = OUT_DIM

    x_flat = x.reshape(B, pn)                      # nn.Flatten(start_dim=-2)

    w1, gamma, beta, w2 = params["w1"], params["gamma"], params["beta"], params["w2"]
    wsz = jnp.dtype(w1.dtype).itemsize

    # hdim split into 2 independent chunks (-> both v7x TCs) when lane-aligned.
    nh = 2 if hdim % 256 == 0 else 1
    hdim_c = hdim // nh

    phys_vmem = _vmem_capacity_bytes()
    vmem_cap = int(phys_vmem * 0.7)

    pn_up = ((pn + 127) // 128) * 128
    # Conservative (all double-buffered) footprint of everything except the w1 tile.
    resident_est = (2 * B * pn_up * 4              # x
                    + 2 * 2 * hdim_c * 4           # gamma, beta
                    + 2 * hdim_c * dim * wsz       # w2 chunk
                    + 2 * B * dim * 4              # partial output
                    + B * hdim_c * 4)              # f32 accumulator scratch

    if tk is None:
        tk = _choose_tk(pn, hdim_c, wsz, vmem_cap, resident_est)
    assert tk % 128 == 0 and tk >= 128, "K-tile must be lane-aligned"

    # Zero-pad the contraction dim (numerically exact) so tk always divides it.
    pn_pad = ((pn + tk - 1) // tk) * tk
    if pn_pad != pn:
        # TODO(synk): pre-pad weights once at init time in real deployments.
        x_flat = jnp.pad(x_flat, ((0, 0), (0, pn_pad - pn)))
        w1 = jnp.pad(w1, ((0, pn_pad - pn), (0, 0)))
    nk = pn_pad // tk

    vmem_need = (2 * B * pn_pad * 4
                 + 2 * tk * hdim_c * wsz
                 + 2 * 2 * hdim_c * 4
                 + 2 * hdim_c * dim * wsz
                 + 2 * B * dim * 4
                 + B * hdim_c * 4)
    vmem_limit = int(min(phys_vmem * 9 // 10,
                         max(vmem_need + (4 << 20), 16 << 20)))

    cost = pl.CostEstimate(
        flops=2 * B * pn * hdim + 2 * B * hdim * dim,
        transcendentals=hdim,                      # rsqrt over the BN features
        bytes_accessed=(B * pn * 4 + pn * hdim * wsz + hdim * dim * wsz
                        + 2 * hdim * 4 + nh * B * dim * 4),
    )

    grid_spec = pltpu.PrefetchScalarGridSpec(
        num_scalar_prefetch=0,
        grid=(nh, nk),
        in_specs=[
            # x: fully resident, sliced in-kernel (constant index -> 1 buffer).
            _block_spec((B, pn_pad), lambda j, k: (0, 0), buffer_count=1),
            _block_spec((tk, hdim_c), lambda j, k: (k, j)),     # w1 stream
            _block_spec((1, hdim_c), lambda j, k: (0, j)),      # gamma
            _block_spec((1, hdim_c), lambda j, k: (0, j)),      # beta
            _block_spec((hdim_c, dim), lambda j, k: (j, 0)),    # w2 rows
        ],
        out_specs=pl.BlockSpec((None, B, dim), lambda j, k: (j, 0, 0)),
        scratch_shapes=[pltpu.VMEM((B, hdim_c), jnp.float32)],
    )

    partials = pl.pallas_call(
        functools.partial(_pooler_head_kernel, tk=tk),
        out_shape=jax.ShapeDtypeStruct((nh, B, dim), jnp.float32),
        grid_spec=grid_spec,
        compiler_params=pltpu.CompilerParams(
            dimension_semantics=("parallel", "arbitrary"),
            vmem_limit_bytes=vmem_limit,
        ),
        cost_estimate=cost,
    )(x_flat, w1, gamma, beta, w2)

    # Sum the per-chunk partials of the second matmul; add b2 exactly once.
    return jnp.sum(partials, axis=0) + params["b2"].astype(jnp.float32)


def init_params(key, seq_len, d_model, weights_dtype=jnp.bfloat16):
    """Synthetic parameters matching Pooler_Head's shapes.

    Weights default to bf16 storage (HBM-bandwidth win; f32 MXU accumulation).
    Biases / BatchNorm affine stay fp32.  b1 is kept for the reference but the
    kernel drops it (exactly cancelled by training-mode BatchNorm).
    """
    pn = seq_len * d_model
    hdim = pn // 2
    dim = OUT_DIM
    k1, k2, k3, k4 = jax.random.split(key, 4)
    # Linear weights stored as [in, out] (transpose of PyTorch's [out, in]).
    w1 = (jax.random.normal(k1, (pn, hdim), jnp.float32)
          * (1.0 / jnp.sqrt(pn))).astype(weights_dtype)
    b1 = jax.random.normal(k2, (1, hdim), jnp.float32) * 0.01
    w2 = (jax.random.normal(k3, (hdim, dim), jnp.float32)
          * (1.0 / jnp.sqrt(hdim))).astype(weights_dtype)
    b2 = jax.random.normal(k4, (1, dim), jnp.float32) * 0.01
    gamma = jnp.ones((1, hdim), jnp.float32)   # PyTorch BN init: gamma=1, beta=0
    beta = jnp.zeros((1, hdim), jnp.float32)
    return {"w1": w1, "b1": b1, "gamma": gamma, "beta": beta, "w2": w2, "b2": b2}


def _reference(x, params):
    """Pure-JAX reference (fp32 math; includes the redundant b1)."""
    B = x.shape[0]
    xf = x.reshape(B, -1).astype(jnp.float32)
    w1 = params["w1"].astype(jnp.float32)
    w2 = params["w2"].astype(jnp.float32)
    h = xf @ w1 + params["b1"]
    mean = jnp.mean(h, axis=0, keepdims=True)
    var = jnp.mean((h - mean) ** 2, axis=0, keepdims=True)
    h = (h - mean) / jnp.sqrt(var + BN_EPS) * params["gamma"] + params["beta"]
    h = jnp.maximum(h, 0.0)
    return h @ w2 + params["b2"]


if __name__ == "__main__":
    key = jax.random.PRNGKey(0)

    # --- shape 1: pn = 1024, hdim = 512 (split into 2 hdim chunks) ----------
    seq_len, d_model, batch = 8, 128, 8
    kx, kp = jax.random.split(key)
    x = jax.random.normal(kx, (batch, seq_len, d_model), jnp.float32)

    # fp32 weights: strict check; tk=256 exercises the multi-K-step pipeline.
    p32 = init_params(kp, seq_len, d_model, weights_dtype=jnp.float32)
    ref = _reference(x, p32)
    out_auto = jax.block_until_ready(pooler_head_forward(x, p32))
    out_tile = jax.block_until_ready(pooler_head_forward(x, p32, tk=256))
    assert out_auto.shape == (batch, OUT_DIM)
    assert jnp.allclose(out_auto, ref, atol=1e-3, rtol=1e-3), "fp32 (auto tk) mismatch"
    assert jnp.allclose(out_tile, ref, atol=1e-3, rtol=1e-3), "fp32 (tk=256) mismatch"

    # bf16 weight storage (default production path): looser tolerance.
    pbf = init_params(kp, seq_len, d_model)
    out_bf = jax.block_until_ready(pooler_head_forward(x, pbf))
    assert jnp.allclose(out_bf, _reference(x, pbf), atol=5e-2, rtol=5e-2), "bf16 mismatch"

    # --- shape 2: pn = 576 (not 128-divisible) -> zero-padded contraction;
    #              hdim = 288 (no lane-aligned split -> single hdim chunk) ----
    seq_len2, d_model2 = 6, 96
    kx2, kp2 = jax.random.split(kp)
    x2 = jax.random.normal(kx2, (batch, seq_len2, d_model2), jnp.float32)
    p2 = init_params(kp2, seq_len2, d_model2, weights_dtype=jnp.float32)
    out2 = jax.block_until_ready(pooler_head_forward(x2, p2))
    assert jnp.allclose(out2, _reference(x2, p2), atol=1e-3, rtol=1e-3), "padded-pn mismatch"

    print("KERNEL_OK")
</pallas_src>

<mosaic_0001>
module attributes {stable_mosaic.version = 11 : i64} {
  func.func @_pooler_head_kernel(%arg0: i32, %arg1: i32, %arg2: memref<8x1024xf32, #tpu.memory_space<vmem>>, %arg3: memref<1024x256xf32, #tpu.memory_space<vmem>>, %arg4: memref<1x256xf32, #tpu.memory_space<vmem>>, %arg5: memref<1x256xf32, #tpu.memory_space<vmem>>, %arg6: memref<256x128xf32, #tpu.memory_space<vmem>>, %arg7: memref<1x8x128xf32, #tpu.memory_space<vmem>>, %arg8: memref<8x256xf32, #tpu.memory_space<vmem>>) attributes {dimension_semantics = [#tpu.dimension_semantics<parallel>, #tpu.dimension_semantics<arbitrary>], iteration_bounds = array<i64: 2, 1>, scalar_prefetch = 0 : i64, scratch_operands = 1 : i64, tpu.core_type = #tpu.core_type<tc>, window_params = [{pipeline_mode = #tpu.pipeline_mode<synchronous>, transform_indices = @transform_0, window_bounds = array<i64: 8, 1024>}, {transform_indices = @transform_1, window_bounds = array<i64: 1024, 256>}, {transform_indices = @transform_2, window_bounds = array<i64: 1, 256>}, {transform_indices = @transform_3, window_bounds = array<i64: 1, 256>}, {transform_indices = @transform_4, window_bounds = array<i64: 256, 128>}, {transform_indices = @transform_5, window_bounds = array<i64: 1, 8, 128>}]} {
    %c0_i32 = arith.constant 0 : i32
    %0 = arith.cmpi eq, %arg1, %c0_i32 : i32
    %1 = arith.extui %0 : i1 to i32
    %c0_i32_0 = arith.constant 0 : i32
    %2 = arith.cmpi ne, %1, %c0_i32_0 : i32
    scf.if %2 {
      %cst_9 = arith.constant 0.000000e+00 : f32
      %15 = vector.broadcast %cst_9 : f32 to vector<8x256xf32>
      %c0_10 = arith.constant 0 : index
      %c0_11 = arith.constant 0 : index
      %16 = vector.load %arg8[%c0_10, %c0_11] : memref<8x256xf32, #tpu.memory_space<vmem>>, vector<8x256xf32>
      tpu.vector_store %arg8[%c0_10, %c0_11], %15 {strides = array<i32>} : memref<8x256xf32, #tpu.memory_space<vmem>>, vector<8x256xf32>,
    } else {
    }
    %c1024_i32 = arith.constant 1024 : i32
    %3 = arith.muli %arg1, %c1024_i32 : i32
    %4 = tpu.assume_multiple %3, 128 : i32
    %c0 = arith.constant 0 : index
    %5 = arith.index_cast %4 : i32 to index
    %6 = vector.load %arg2[%c0, %5] : memref<8x1024xf32, #tpu.memory_space<vmem>>, vector<8x1024xf32>
    %c0_1 = arith.constant 0 : index
    %c0_2 = arith.constant 0 : index
    %7 = vector.load %arg3[%c0_1, %c0_2] : memref<1024x256xf32, #tpu.memory_space<vmem>>, vector<1024x256xf32>
    %c0_3 = arith.constant 0 : index
    %c0_4 = arith.constant 0 : index
    %8 = vector.load %arg8[%c0_3, %c0_4] : memref<8x256xf32, #tpu.memory_space<vmem>>, vector<8x256xf32>
    %cst = arith.constant dense<0.000000e+00> : vector<8x256xf32>
    %9 = tpu.matmul %6, %7, %cst {dimension_numbers = #tpu.dot_dimension_numbers<[1], [0], [0], [1], [0, 0, 1, 1], [], []>} : vector<8x1024xf32>, vector<1024x256xf32>, vector<8x256xf32> -> vector<8x256xf32>
    %10 = arith.addf %8, %9 : vector<8x256xf32>
    %c0_5 = arith.constant 0 : index
    %c0_6 = arith.constant 0 : index
    %11 = vector.load %arg8[%c0_5, %c0_6] : memref<8x256xf32, #tpu.memory_space<vmem>>, vector<8x256xf32>
    tpu.vector_store %arg8[%c0_5, %c0_6], %10 {strides = array<i32>} : memref<8x256xf32, #tpu.memory_space<vmem>>, vector<8x256xf32>,
    %c0_i32_7 = arith.constant 0 : i32
    %12 = arith.cmpi eq, %arg1, %c0_i32_7 : i32
    %13 = arith.extui %12 : i1 to i32
    %c0_i32_8 = arith.constant 0 : i32
    %14 = arith.cmpi ne, %13, %c0_i32_8 : i32
    scf.if %14 {
      %c0_9 = arith.constant 0 : index
      %c0_10 = arith.constant 0 : index
      %15 = vector.load %arg8[%c0_9, %c0_10] : memref<8x256xf32, #tpu.memory_space<vmem>>, vector<8x256xf32>
      %cst_11 = arith.constant dense<0.000000e+00> : vector<256xf32>
      %16 = vector.multi_reduction <add>, %15, %cst_11 [0] : vector<8x256xf32> to vector<256xf32>
      %17 = vector.shape_cast %16 : vector<256xf32> to vector<1x256xf32>
      %cst_12 = arith.constant 8.000000e+00 : f32
      %18 = vector.broadcast %cst_12 : f32 to vector<1x256xf32>
      %19 = arith.divf %17, %18 : vector<1x256xf32>
      %20 = vector.broadcast %19 : vector<1x256xf32> to vector<8x256xf32>
      %21 = arith.subf %15, %20 : vector<8x256xf32>
      %22 = arith.mulf %21, %21 : vector<8x256xf32>
      %cst_13 = arith.constant dense<0.000000e+00> : vector<256xf32>
      %23 = vector.multi_reduction <add>, %22, %cst_13 [0] : vector<8x256xf32> to vector<256xf32>
      %24 = vector.shape_cast %23 : vector<256xf32> to vector<1x256xf32>
      %cst_14 = arith.constant 8.000000e+00 : f32
      %25 = vector.broadcast %cst_14 : f32 to vector<1x256xf32>
      %26 = arith.divf %24, %25 : vector<1x256xf32>
      %cst_15 = arith.constant 9.99999974E-6 : f32
      %27 = vector.broadcast %cst_15 : f32 to vector<1x256xf32>
      %28 = arith.addf %26, %27 : vector<1x256xf32>
      %29 = math.rsqrt %28 : vector<1x256xf32>
      %30 = vector.broadcast %29 : vector<1x256xf32> to vector<8x256xf32>
      %31 = arith.mulf %21, %30 : vector<8x256xf32>
      %c0_16 = arith.constant 0 : index
      %c0_17 = arith.constant 0 : index
      %32 = vector.load %arg4[%c0_16, %c0_17] : memref<1x256xf32, #tpu.memory_space<vmem>>, vector<1x256xf32>
      %33 = vector.broadcast %32 : vector<1x256xf32> to vector<8x256xf32>
      %34 = arith.mulf %31, %33 : vector<8x256xf32>
      %c0_18 = arith.constant 0 : index
      %c0_19 = arith.constant 0 : index
      %35 = vector.load %arg5[%c0_18, %c0_19] : memref<1x256xf32, #tpu.memory_space<vmem>>, vector<1x256xf32>
      %36 = vector.broadcast %35 : vector<1x256xf32> to vector<8x256xf32>
      %37 = arith.addf %34, %36 : vector<8x256xf32>
      %cst_20 = arith.constant 0.000000e+00 : f32
      %38 = vector.broadcast %cst_20 : f32 to vector<8x256xf32>
      %39 = arith.maximumf %37, %38 : vector<8x256xf32>
      %c0_21 = arith.constant 0 : index
      %c0_22 = arith.constant 0 : index
      %40 = vector.load %arg6[%c0_21, %c0_22] : memref<256x128xf32, #tpu.memory_space<vmem>>, vector<256x128xf32>
      %cst_23 = arith.constant dense<0.000000e+00> : vector<8x128xf32>
      %41 = tpu.matmul %39, %40, %cst_23 {dimension_numbers = #tpu.dot_dimension_numbers<[1], [0], [0], [1], [0, 0, 1, 1], [], []>} : vector<8x256xf32>, vector<256x128xf32>, vector<8x128xf32> -> vector<8x128xf32>
      %c0_24 = arith.constant 0 : index
      %c0_25 = arith.constant 0 : index
      %c0_26 = arith.constant 0 : index
      %42 = vector.load %arg7[%c0_24, %c0_25, %c0_26] : memref<1x8x128xf32, #tpu.memory_space<vmem>>, vector<1x8x128xf32>
      %43 = vector.shape_cast %42 : vector<1x8x128xf32> to vector<8x128xf32>
      %44 = vector.shape_cast %41 : vector<8x128xf32> to vector<1x8x128xf32>
      tpu.vector_store %arg7[%c0_24, %c0_25, %c0_26], %44 {strides = array<i32>} : memref<1x8x128xf32, #tpu.memory_space<vmem>>, vector<1x8x128xf32>,
    } else {
    }
    return
  }
  func.func @transform_0(%arg0: i32, %arg1: i32) -> (i32, i32) {
    %c0_i32 = arith.constant 0 : i32
    %c0_i32_0 = arith.constant 0 : i32
    %c0_i32_1 = arith.constant 0 : i32
    return %c0_i32, %c0_i32_0 : i32, i32
  }
  func.func @transform_1(%arg0: i32, %arg1: i32) -> (i32, i32) {
    %c0_i32 = arith.constant 0 : i32
    return %arg1, %arg0 : i32, i32
  }
  func.func @transform_2(%arg0: i32, %arg1: i32) -> (i32, i32) {
    %c0_i32 = arith.constant 0 : i32
    %c0_i32_0 = arith.constant 0 : i32
    return %c0_i32, %arg0 : i32, i32
  }
  func.func @transform_3(%arg0: i32, %arg1: i32) -> (i32, i32) {
    %c0_i32 = arith.constant 0 : i32
    %c0_i32_0 = arith.constant 0 : i32
    return %c0_i32, %arg0 : i32, i32
  }
  func.func @transform_4(%arg0: i32, %arg1: i32) -> (i32, i32) {
    %c0_i32 = arith.constant 0 : i32
    %c0_i32_0 = arith.constant 0 : i32
    return %arg0, %c0_i32 : i32, i32
  }
  func.func @transform_5(%arg0: i32, %arg1: i32) -> (i32, i32, i32) {
    %c0_i32 = arith.constant 0 : i32
    %c0_i32_0 = arith.constant 0 : i32
    %c0_i32_1 = arith.constant 0 : i32
    return %arg0, %c0_i32, %c0_i32_0 : i32, i32, i32
  }
}

</mosaic_0001>

<llo_original>
// kernel: tpu_custom_call.1
$region0: #{tpu_custom_call.1}
  #allocation0 [shape = 'u32[]', space=smem, size = 0x4, offset = 0x4, fixed_abs, tag = 'smem constant byte address 0x4 - core index']
  #allocation1 [shape = 'u32[72,128]{1,0:T(1,128)}', space=vmem, size = 0x9000, scoped, tag = 'internal scratch']
  #allocation2 [shape = 'f32[8,256]{1,0:T(8,128)}', space=vmem, size = 0x2000, scoped, tag = 'scratch operand']
  %s0 = inlined_call_operand.hbm [shape: f32[8,1024], index: 0, kind: input, shape index: {}]
  %s1 = inlined_call_operand.hbm [shape: f32[1024,512], index: 1, kind: input, shape index: {}]
  %s2 = inlined_call_operand.hbm [shape: f32[1,512], index: 2, kind: input, shape index: {}]
  %s3 = inlined_call_operand.hbm [shape: f32[1,512], index: 3, kind: input, shape index: {}]
  %s4 = inlined_call_operand.hbm [shape: f32[512,128], index: 4, kind: input, shape index: {}]
  %s5 = inlined_call_operand.hbm [shape: f32[2,8,128], index: 5, kind: output, shape index: {}]
  %s6 = sld [smem:[#allocation0]]
  $region81: #{tpu_custom_call.1} parent=0
    _
  %s8 = ssub.s32 1, %s6
  %s9 = scalar_select 0, %s8, %s6
  $region1: #{tpu_custom_call.1} parent=0
    #allocation3 [shape = 'u8[32768]{0}', space=vmem, size = 0x8000, scoped, tag = 'input window, operand 0, single buffered']
    #allocation4 [shape = 's32[2]{0}', space=sflag, size = 0x8, scoped, tag = 'scoped memory for tpu_custom_call.1']
    #allocation5 [shape = 's32[2]{0}', space=sflag, size = 0x8, scoped, tag = 'scoped memory for tpu_custom_call.1']
    #allocation6 [shape = 'u8[2097152]{0}', space=vmem, size = 0x200000, scoped, tag = 'input window, operand 1']
    #allocation7 [shape = 's32[2]{0}', space=sflag, size = 0x8, scoped, tag = 'scoped memory for tpu_custom_call.1']
    #allocation8 [shape = 'u8[2048]{0}', space=vmem, size = 0x800, scoped, tag = 'input window, operand 2']
    #allocation9 [shape = 'u8[2048]{0}', space=vmem, size = 0x800, scoped, tag = 'input window, operand 3']
    #allocation10 [shape = 's32[2]{0}', space=sflag, size = 0x8, scoped, tag = 'scoped memory for tpu_custom_call.1']
    #allocation11 [shape = 'u8[262144]{0}', space=vmem, size = 0x40000, scoped, tag = 'input window, operand 4']
    #allocation12 [shape = 'u8[8192]{0}', space=vmem, size = 0x2000, scoped, tag = 'output window, operand 0']
    %10 = vsyncpa [#allocation4], 0
    %11 = vsyncpa [#allocation7], 0
    %s12 = scalar_lea.sflag [#allocation7], 1
    %13 = vsyncpa %s12, 0
    %14 = vsyncpa [#allocation10], 0
    %s15 = scalar_lea.sflag [#allocation10], 1
    %16 = vsyncpa %s15, 0
    %17 = vsyncpa [#allocation5], 0
    %s18 = scalar_lea.sflag [#allocation5], 1
    %19 = vsyncpa %s18, 0
    loop: start=0, step=1, limit=4
    $region2: #{tpu_custom_call.1} parent=1 // loop_pre_header
      _
    $region3: #{tpu_custom_call.1} parent=1 // loop_header
      %s21 = sphi 0, %s25
      %p22 = scmp.ge.s32.totalorder %s21, 4
      %s28 = sphi 0, %s40
      %s29 = sphi 0, %s36
      %s30 = sphi 0, %s28
      %s31 = sphi 0, %s29
      %s32 = sphi 0, %s30
      %s33 = sphi 0, %s31
      %s41 = sphi 0, %s41
      %s43 = sphi 0, %s41
      %s44 = sphi 0, %s43
      %s58 = sphi 0, %s44
      %s66 = sphi 0, %s68
      %s69 = sphi 0, %s66
      %s70 = sphi 0, %s69
      %s86 = sphi 0, %s70
      %s92 = sphi 0, %s94
      %s95 = sphi 0, %s92
      %s96 = sphi 0, %s95
      %s112 = sphi 0, %s96
      %s118 = sphi 0, %s120
      %s121 = sphi 0, %s118
      %s122 = sphi 0, %s121
      %s138 = sphi 0, %s122
      %s144 = sphi 0, %s146
      %s147 = sphi 0, %s144
      %s148 = sphi 0, %s147
      %s164 = sphi 0, %s148
      %s170 = sphi 0, %s172
      %s173 = sphi 0, %s170
      %s174 = sphi 0, %s173
      %s190 = sphi 0, %s174
    $region4: #{tpu_custom_call.1} parent=1 // loop_header_branch
      %24 = sbr.rel (%p22) target = $region8
    $region5: #{tpu_custom_call.1} parent=1 // loop_body
      %s26 = ssub.s32 %s21, 1
      %s27 = ssub.s32 %s21, 2
      %s34 = sadd.s32 1, %s29
      %p35 = scmp.ge.s32.totalorder %s34, 1
      %s36 = scalar_select %p35, 0, %s34
      %s37 = sadd.s32 1, %s28
      %s38 = scalar_select %p35, %s37, %s28
      %p39 = scmp.ge.s32.totalorder %s38, 2
      %s40 = scalar_select %p39, 0, %s38
      %s42 = sadd.s32 %s41, 1
      %p45 = scmp.eq.s32.totalorder %s21, 1
      %p46 = scmp.ne.s32.totalorder %s41, %s43
      %p47 = scmp.eq.s32.totalorder %s21, 0
      %p48 = por %p46, %p47
      %p49 = scmp.ne.s32.totalorder %s41, %s43
      %p50 = scmp.eq.s32.totalorder %s26, 1
      %p51 = por %p49, %p50
      %p52 = scmp.ne.s32.totalorder %s43, %s44
      %p53 = scmp.eq.s32.totalorder %s26, 0
      %p54 = por %p52, %p53
      %p55 = scmp.ne.s32.totalorder %s43, %s44
      %p56 = scmp.eq.s32.totalorder %s27, 1
      %p57 = por %p55, %p56
      %p59 = scmp.ne.s32.totalorder %s44, %s58
      %p60 = scmp.eq.s32.totalorder %s27, 0
      %p61 = por %p59, %p60
      %s62 = ssub.s32 %s29, %s36
      %s63 = ssub.s32 %s28, %s40
      %s64 = sor.u32 %s62, %s63
      %p65 = scmp.eq.s32.totalorder %s64, 0
      %s67 = sadd.s32 %s66, 1
      %s68 = scalar_select %p65, %s66, %s67
      %p71 = pneg %p65
      %p72 = scmp.eq.s32.totalorder %s21, 1
      %p73 = por %p71, %p72
      %p74 = scmp.ne.s32.totalorder %s66, %s69
      %p75 = scmp.eq.s32.totalorder %s21, 0
      %p76 = por %p74, %p75
      %p77 = scmp.ne.s32.totalorder %s66, %s69
      %p78 = scmp.eq.s32.totalorder %s26, 1
      %p79 = por %p77, %p78
      %p80 = scmp.ne.s32.totalorder %s69, %s70
      %p81 = scmp.eq.s32.totalorder %s26, 0
      %p82 = por %p80, %p81
      %p83 = scmp.ne.s32.totalorder %s69, %s70
      %p84 = scmp.eq.s32.totalorder %s27, 1
      %p85 = por %p83, %p84
      %p87 = scmp.ne.s32.totalorder %s70, %s86
      %p88 = scmp.eq.s32.totalorder %s27, 0
      %p89 = por %p87, %p88
      %s90 = ssub.s32 %s28, %s40
      %p91 = scmp.eq.s32.totalorder %s90, 0
      %s93 = sadd.s32 %s92, 1
      %s94 = scalar_select %p91, %s92, %s93
      %p97 = pneg %p91
      %p98 = scmp.eq.s32.totalorder %s21, 1
      %p99 = por %p97, %p98
      %p100 = scmp.ne.s32.totalorder %s92, %s95
      %p101 = scmp.eq.s32.totalorder %s21, 0
      %p102 = por %p100, %p101
      %p103 = scmp.ne.s32.totalorder %s92, %s95
      %p104 = scmp.eq.s32.totalorder %s26, 1
      %p105 = por %p103, %p104
      %p106 = scmp.ne.s32.totalorder %s95, %s96
      %p107 = scmp.eq.s32.totalorder %s26, 0
      %p108 = por %p106, %p107
      %p109 = scmp.ne.s32.totalorder %s95, %s96
      %p110 = scmp.eq.s32.totalorder %s27, 1
      %p111 = por %p109, %p110
      %p113 = scmp.ne.s32.totalorder %s96, %s112
      %p114 = scmp.eq.s32.totalorder %s27, 0
      %p115 = por %p113, %p114
      %s116 = ssub.s32 %s28, %s40
      %p117 = scmp.eq.s32.totalorder %s116, 0
      %s119 = sadd.s32 %s118, 1
      %s120 = scalar_select %p117, %s118, %s119
      %p123 = pneg %p117
      %p124 = scmp.eq.s32.totalorder %s21, 1
      %p125 = por %p123, %p124
      %p126 = scmp.ne.s32.totalorder %s118, %s121
      %p127 = scmp.eq.s32.totalorder %s21, 0
      %p128 = por %p126, %p127
      %p129 = scmp.ne.s32.totalorder %s118, %s121
      %p130 = scmp.eq.s32.totalorder %s26, 1
      %p131 = por %p129, %p130
      %p132 = scmp.ne.s32.totalorder %s121, %s122
      %p133 = scmp.eq.s32.totalorder %s26, 0
      %p134 = por %p132, %p133
      %p135 = scmp.ne.s32.totalorder %s121, %s122
      %p136 = scmp.eq.s32.totalorder %s27, 1
      %p137 = por %p135, %p136
      %p139 = scmp.ne.s32.totalorder %s122, %s138
      %p140 = scmp.eq.s32.totalorder %s27, 0
      %p141 = por %p139, %p140
      %s142 = ssub.s32 %s28, %s40
      %p143 = scmp.eq.s32.totalorder %s142, 0
      %s145 = sadd.s32 %s144, 1
      %s146 = scalar_select %p143, %s144, %s145
      %p149 = pneg %p143
      %p150 = scmp.eq.s32.totalorder %s21, 1
      %p151 = por %p149, %p150
      %p152 = scmp.ne.s32.totalorder %s144, %s147
      %p153 = scmp.eq.s32.totalorder %s21, 0
      %p154 = por %p152, %p153
      %p155 = scmp.ne.s32.totalorder %s144, %s147
      %p156 = scmp.eq.s32.totalorder %s26, 1
      %p157 = por %p155, %p156
      %p158 = scmp.ne.s32.totalorder %s147, %s148
      %p159 = scmp.eq.s32.totalorder %s26, 0
      %p160 = por %p158, %p159
      %p161 = scmp.ne.s32.totalorder %s147, %s148
      %p162 = scmp.eq.s32.totalorder %s27, 1
      %p163 = por %p161, %p162
      %p165 = scmp.ne.s32.totalorder %s148, %s164
      %p166 = scmp.eq.s32.totalorder %s27, 0
      %p167 = por %p165, %p166
      %s168 = ssub.s32 %s28, %s40
      %p169 = scmp.eq.s32.totalorder %s168, 0
      %s171 = sadd.s32 %s170, 1
      %s172 = scalar_select %p169, %s170, %s171
      %p175 = pneg %p169
      %p176 = scmp.eq.s32.totalorder %s21, 1
      %p177 = por %p175, %p176
      %p178 = scmp.ne.s32.totalorder %s170, %s173
      %p179 = scmp.eq.s32.totalorder %s21, 0
      %p180 = por %p178, %p179
      %p181 = scmp.ne.s32.totalorder %s170, %s173
      %p182 = scmp.eq.s32.totalorder %s26, 1
      %p183 = por %p181, %p182
      %p184 = scmp.ne.s32.totalorder %s173, %s174
      %p185 = scmp.eq.s32.totalorder %s26, 0
      %p186 = por %p184, %p185
      %p187 = scmp.ne.s32.totalorder %s173, %s174
      %p188 = scmp.eq.s32.totalorder %s27, 1
      %p189 = por %p187, %p188
      %p191 = scmp.ne.s32.totalorder %s174, %s190
      %p192 = scmp.eq.s32.totalorder %s27, 0
      %p193 = por %p191, %p192
      %p194 = scmp.le.s32.totalorder 1, %s21
      %p195 = scmp.lt.s32.totalorder %s21, 3
      %p196 = pnand %p194, %p195
      %p197 = pneg %p196
      // Predicated region
      $region9: #{tpu_custom_call.1} parent=5 // pred_check
        _
      $region10: #{tpu_custom_call.1} parent=5 // pred_check_branch
        %199 = sbr.rel (%p196) target = $region12
      $region11: #{tpu_custom_call.1} parent=5 // pred_region
        %s200 = ssub.s32 %s21, 1
        // Predicated region
        $region13: #{tpu_custom_call.1} parent=11 // pred_check
          %p201 = pneg %p54
        $region14: #{tpu_custom_call.1} parent=11 // pred_check_branch
          %203 = sbr.rel (%p201) target = $region16
        $region15: #{tpu_custom_call.1} parent=11 // pred_region
          %205 = vsyncadd [#allocation4], 0
          %s207 = sshll.u32 %s0, 4
          %s208 = int_to_ptr.hbm [resolvable:$true] %s207
          %s209 = sshll.u32 [#allocation3], 4
          %s210 = int_to_ptr.vmem [resolvable:$true] %s209
          %212 = dma.hbm_to_vmem [thread:$0]  %s208, 1024, %s210, [#allocation4]
        $region16: #{tpu_custom_call.1} parent=11 // pred_fallthru
          _
      $region12: #{tpu_custom_call.1} parent=5 // pred_fallthru
        _
      %p213 = scmp.lt.s32.totalorder %s21, 2
      // Predicated region
      $region17: #{tpu_custom_call.1} parent=5 // pred_check
        %p214 = pneg %p213
      $region18: #{tpu_custom_call.1} parent=5 // pred_check_branch
        %216 = sbr.rel (%p214) target = $region20
      $region19: #{tpu_custom_call.1} parent=5 // pred_region
        // Predicated region
        $region21: #{tpu_custom_call.1} parent=19 // pred_check
          %p217 = pneg %p76
        $region22: #{tpu_custom_call.1} parent=19 // pred_check_branch
          %219 = sbr.rel (%p217) target = $region24
        $region23: #{tpu_custom_call.1} parent=19 // pred_region
          %s220 = sand.u32 %s21, 1
          %s221 = scalar_lea.sflag [#allocation7], %s220
          %s222 = sand.u32 %s66, 1
          %s223 = smul.addr %s222, 2048
          %s224 = scalar_lea.vmem [#allocation6], %s223
          %s225 = smul.u32 128, %s29
          %s226 = smul.u32 2, %s28
          %228 = vsyncadd %s221, 0
          %s229 = smul.addr %s225, 4
          %s230 = sadd.s32 %s226, %s229
          %s231 = smul.addr %s230, 8
          %s232 = scalar_lea.hbm %s1, %s231
          %s233 = sshll.u32 %s232, 4
          %s234 = int_to_ptr.hbm [resolvable:$true] %s233
          %s235 = sshll.u32 %s224, 4
          %s236 = int_to_ptr.vmem [resolvable:$true] %s235
          %241 = dma.hbm_to_vmem [thread:$0]  %s234, 32768, %s236, %s221, 512, 256, 16
        $region24: #{tpu_custom_call.1} parent=19 // pred_fallthru
          _
        // Predicated region
        $region25: #{tpu_custom_call.1} parent=19 // pred_check
          %p242 = pneg %p102
        $region26: #{tpu_custom_call.1} parent=19 // pred_check_branch
          %244 = sbr.rel (%p242) target = $region28
        $region27: #{tpu_custom_call.1} parent=19 // pred_region
          %s245 = sand.u32 %s21, 1
          %s246 = scalar_lea.sflag [#allocation7], %s245
          %s247 = sand.u32 %s92, 1
          %s248 = smul.addr %s247, 2
          %s249 = scalar_lea.vmem [#allocation8], %s248
          %s250 = smul.u32 2, %s28
          %252 = vsyncadd %s246, 0
          %s253 = scalar_lea.hbm %s2, %s250
          %s255 = sshll.u32 %s253, 4
          %s256 = int_to_ptr.hbm [resolvable:$true] %s255
          %s257 = sshll.u32 %s249, 4
          %s258 = int_to_ptr.vmem [resolvable:$true] %s257
          %260 = dma.hbm_to_vmem [thread:$0]  %s256, 32, %s258, %s246
        $region28: #{tpu_custom_call.1} parent=19 // pred_fallthru
          _
        // Predicated region
        $region29: #{tpu_custom_call.1} parent=19 // pred_check
          %p261 = pneg %p128
        $region30: #{tpu_custom_call.1} parent=19 // pred_check_branch
          %263 = sbr.rel (%p261) target = $region32
        $region31: #{tpu_custom_call.1} parent=19 // pred_region
          %s264 = sand.u32 %s21, 1
          %s265 = scalar_lea.sflag [#allocation10], %s264
          %s266 = sand.u32 %s118, 1
          %s267 = smul.addr %s266, 2
          %s268 = scalar_lea.vmem [#allocation9], %s267
          %s269 = smul.u32 2, %s28
          %271 = vsyncadd %s265, 0
          %s272 = scalar_lea.hbm %s3, %s269
          %s274 = sshll.u32 %s272, 4
          %s275 = int_to_ptr.hbm [resolvable:$true] %s274
          %s276 = sshll.u32 %s268, 4
          %s277 = int_to_ptr.vmem [resolvable:$true] %s276
          %279 = dma.hbm_to_vmem [thread:$0]  %s275, 32, %s277, %s265
        $region32: #{tpu_custom_call.1} parent=19 // pred_fallthru
          _
        // Predicated region
        $region33: #{tpu_custom_call.1} parent=19 // pred_check
          %p280 = pneg %p154
        $region34: #{tpu_custom_call.1} parent=19 // pred_check_branch
          %282 = sbr.rel (%p280) target = $region36
        $region35: #{tpu_custom_call.1} parent=19 // pred_region
          %s283 = sand.u32 %s21, 1
          %s284 = scalar_lea.sflag [#allocation10], %s283
          %s285 = sand.u32 %s144, 1
          %s286 = smul.addr %s285, 256
          %s287 = scalar_lea.vmem [#allocation11], %s286
          %s288 = smul.u32 32, %s28
          %290 = vsyncadd %s284, 0
          %s291 = smul.addr %s288, 8
          %s292 = scalar_lea.hbm %s4, %s291
          %s293 = sshll.u32 %s292, 4
          %s294 = int_to_ptr.hbm [resolvable:$true] %s293
          %s295 = sshll.u32 %s287, 4
          %s296 = int_to_ptr.vmem [resolvable:$true] %s295
          %301 = dma.hbm_to_vmem [thread:$0]  %s294, 4096, %s296, %s284, 128, 128, 8
        $region36: #{tpu_custom_call.1} parent=19 // pred_fallthru
          _
      $region20: #{tpu_custom_call.1} parent=5 // pred_fallthru
        _
      %p302 = scmp.le.s32.totalorder 1, %s21
      %p303 = scmp.lt.s32.totalorder %s21, 3
      %p304 = pnand %p302, %p303
      %p305 = pneg %p304
      // Predicated region
      $region37: #{tpu_custom_call.1} parent=5 // pred_check
        _
      $region38: #{tpu_custom_call.1} parent=5 // pred_check_branch
        %307 = sbr.rel (%p304) target = $region40
      $region39: #{tpu_custom_call.1} parent=5 // pred_region
        %s308 = ssub.s32 %s21, 1
        // Predicated region
        $region41: #{tpu_custom_call.1} parent=39 // pred_check
          %p309 = pneg %p54
        $region42: #{tpu_custom_call.1} parent=39 // pred_check_branch
          %311 = sbr.rel (%p309) target = $region44
        $region43: #{tpu_custom_call.1} parent=39 // pred_region
          %313 = dma.done [#allocation4], 1024
        $region44: #{tpu_custom_call.1} parent=39 // pred_fallthru
          _
        %s314 = sand.u32 %s26, 1
        %s315 = scalar_lea.sflag [#allocation7], %s314
        %s316 = sand.u32 %s69, 1
        %s317 = smul.addr %s316, 2048
        %s318 = scalar_lea.vmem [#allocation6], %s317
        // Predicated region
        $region45: #{tpu_custom_call.1} parent=39 // pred_check
          %p319 = pneg %p82
        $region46: #{tpu_custom_call.1} parent=39 // pred_check_branch
          %321 = sbr.rel (%p319) target = $region48
        $region47: #{tpu_custom_call.1} parent=39 // pred_region
          %323 = dma.done %s315, 32768
        $region48: #{tpu_custom_call.1} parent=39 // pred_fallthru
          _
        %s324 = sand.u32 %s26, 1
        %s325 = scalar_lea.sflag [#allocation7], %s324
        %s326 = sand.u32 %s95, 1
        %s327 = smul.addr %s326, 2
        %s328 = scalar_lea.vmem [#allocation8], %s327
        // Predicated region
        $region49: #{tpu_custom_call.1} parent=39 // pred_check
          %p329 = pneg %p108
        $region50: #{tpu_custom_call.1} parent=39 // pred_check_branch
          %331 = sbr.rel (%p329) target = $region52
        $region51: #{tpu_custom_call.1} parent=39 // pred_region
          %333 = dma.done %s325, 32
        $region52: #{tpu_custom_call.1} parent=39 // pred_fallthru
          _
        %s334 = sand.u32 %s26, 1
        %s335 = scalar_lea.sflag [#allocation10], %s334
        %s336 = sand.u32 %s121, 1
        %s337 = smul.addr %s336, 2
        %s338 = scalar_lea.vmem [#allocation9], %s337
        // Predicated region
        $region53: #{tpu_custom_call.1} parent=39 // pred_check
          %p339 = pneg %p134
        $region54: #{tpu_custom_call.1} parent=39 // pred_check_branch
          %341 = sbr.rel (%p339) target = $region56
        $region55: #{tpu_custom_call.1} parent=39 // pred_region
          %343 = dma.done %s335, 32
        $region56: #{tpu_custom_call.1} parent=39 // pred_fallthru
          _
        %s344 = sand.u32 %s26, 1
        %s345 = scalar_lea.sflag [#allocation10], %s344
        %s346 = sand.u32 %s147, 1
        %s347 = smul.addr %s346, 256
        %s348 = scalar_lea.vmem [#allocation11], %s347
        // Predicated region
        $region57: #{tpu_custom_call.1} parent=39 // pred_check
          %p349 = pneg %p160
        $region58: #{tpu_custom_call.1} parent=39 // pred_check_branch
          %351 = sbr.rel (%p349) target = $region60
        $region59: #{tpu_custom_call.1} parent=39 // pred_region
          %353 = dma.done %s345, 4096
        $region60: #{tpu_custom_call.1} parent=39 // pred_fallthru
          _
        %p354 = pneg %p54
        %p355 = pneg %p51
        %s356 = sand.u32 %s26, 1
        %s357 = scalar_lea.sflag [#allocation7], %s356
        %s358 = sand.u32 %s69, 1
        %s359 = smul.addr %s358, 2048
        %s360 = scalar_lea.vmem [#allocation6], %s359
        %p361 = pneg %p82
        %p362 = pneg %p79
        %s363 = sand.u32 %s26, 1
        %s364 = scalar_lea.sflag [#allocation7], %s363
        %s365 = sand.u32 %s95, 1
        %s366 = smul.addr %s365, 2
        %s367 = scalar_lea.vmem [#allocation8], %s366
        %p368 = pneg %p108
        %p369 = pneg %p105
        %s370 = sand.u32 %s26, 1
        %s371 = scalar_lea.sflag [#allocation10], %s370
        %s372 = sand.u32 %s121, 1
        %s373 = smul.addr %s372, 2
        %s374 = scalar_lea.vmem [#allocation9], %s373
        %p375 = pneg %p134
        %p376 = pneg %p131
        %s377 = sand.u32 %s26, 1
        %s378 = scalar_lea.sflag [#allocation10], %s377
        %s379 = sand.u32 %s147, 1
        %s380 = smul.addr %s379, 256
        %s381 = scalar_lea.vmem [#allocation11], %s380
        %p382 = pneg %p160
        %p383 = pneg %p157
        %p384 = pneg %p186
        %p385 = pneg %p183
        %s386 = sand.u32 %s173, 1
        %s387 = scalar_lea.sflag [#allocation5], %s386
        %s388 = sand.u32 %s173, 1
        %s389 = smul.addr %s388, 8
        %s390 = scalar_lea.vmem [#allocation12], %s389
        %s391 = smul.u32 128, %s31
        %s392 = smul.u32 2, %s30
        %s393 = smul.u32 2, %s30
        %s394 = smul.u32 2, %s30
        %s395 = smul.u32 32, %s30
        %p396 = scmp.eq.s32.totalorder %s31, 0
        // Predicated region
        $region61: #{tpu_custom_call.1} parent=39 // pred_check
          %p397 = pneg %p396
        $region62: #{tpu_custom_call.1} parent=39 // pred_check_branch
          %399 = sbr.rel (%p397) target = $region64
        $region63: #{tpu_custom_call.1} parent=39 // pred_region
          %400 = vst [vmem:[#allocation2] sm:$0xff] 0.0
          %401 = vst [vmem:[#allocation2 + $0x8] sm:$0xff] 0.0
        $region64: #{tpu_custom_call.1} parent=39 // pred_fallthru
          _
        %s402 = smul.u32 %s31, 1024
        %s403 = sshra.s32 %s402, 7
        %s404 = sand.u32 %s402, 127
        %s405 = smul.addr %s403, 8
        %s406 = scalar_lea.vmem [#allocation3], %s405
        %v407 = vld [vmem:[%s406] sm:$0xff]
        %v408 = vld [vmem:[%s406 + $0x8] sm:$0xff]
        %v409 = vld [vmem:[%s406 + $0x10] sm:$0xff]
        %v410 = vld [vmem:[%s406 + $0x18] sm:$0xff]
        %v411 = vld [vmem:[%s406 + $0x20] sm:$0xff]
        %v412 = vld [vmem:[%s406 + $0x28] sm:$0xff]
        %v413 = vld [vmem:[%s406 + $0x30] sm:$0xff]
        %v414 = vld [vmem:[%s406 + $0x38] sm:$0xff]
        %v415 = vld [vmem:[%s318] sm:$0xff]
        %v416 = vld [vmem:[%s318 + $0x8] sm:$0xff]
        %v417 = vld [vmem:[%s318 + $0x10] sm:$0xff]
        %v418 = vld [vmem:[%s318 + $0x18] sm:$0xff]
        %v419 = vld [vmem:[%s318 + $0x20] sm:$0xff]
        %v420 = vld [vmem:[%s318 + $0x28] sm:$0xff]
        %v421 = vld [vmem:[%s318 + $0x30] sm:$0xff]
        %v422 = vld [vmem:[%s318 + $0x38] sm:$0xff]
        %v423 = vld [vmem:[%s318 + $0x40] sm:$0xff]
        %v424 = vld [vmem:[%s318 + $0x48] sm:$0xff]
        %v425 = vld [vmem:[%s318 + $0x50] sm:$0xff]
        %v426 = vld [vmem:[%s318 + $0x58] sm:$0xff]
        %v427 = vld [vmem:[%s318 + $0x60] sm:$0xff]
        %v428 = vld [vmem:[%s318 + $0x68] sm:$0xff]
        %v429 = vld [vmem:[%s318 + $0x70] sm:$0xff]
        %v430 = vld [vmem:[%s318 + $0x78] sm:$0xff]
        %v431 = vld [vmem:[%s318 + $0x80] sm:$0xff]
        %v432 = vld [vmem:[%s318 + $0x88] sm:$0xff]
        %v433 = vld [vmem:[%s318 + $0x90] sm:$0xff]
        %v434 = vld [vmem:[%s318 + $0x98] sm:$0xff]
        %v435 = vld [vmem:[%s318 + $0xa0] sm:$0xff]
        %v436 = vld [vmem:[%s318 + $0xa8] sm:$0xff]
        %v437 = vld [vmem:[%s318 + $0xb0] sm:$0xff]
        %v438 = vld [vmem:[%s318 + $0xb8] sm:$0xff]
        %v439 = vld [vmem:[%s318 + $0xc0] sm:$0xff]
        %v440 = vld [vmem:[%s318 + $0xc8] sm:$0xff]
        %v441 = vld [vmem:[%s318 + $0xd0] sm:$0xff]
        %v442 = vld [vmem:[%s318 + $0xd8] sm:$0xff]
        %v443 = vld [vmem:[%s318 + $0xe0] sm:$0xff]
        %v444 = vld [vmem:[%s318 + $0xe8] sm:$0xff]
        %v445 = vld [vmem:[%s318 + $0xf0] sm:$0xff]
        %v446 = vld [vmem:[%s318 + $0xf8] sm:$0xff]
        %v447 = vld [vmem:[%s318 + $0x100] sm:$0xff]
        %v448 = vld [vmem:[%s318 + $0x108] sm:$0xff]
        %v449 = vld [vmem:[%s318 + $0x110] sm:$0xff]
        %v450 = vld [vmem:[%s318 + $0x118] sm:$0xff]
        %v451 = vld [vmem:[%s318 + $0x120] sm:$0xff]
        %v452 = vld [vmem:[%s318 + $0x128] sm:$0xff]
        %v453 = vld [vmem:[%s318 + $0x130] sm:$0xff]
        %v454 = vld [vmem:[%s318 + $0x138] sm:$0xff]
        %v455 = vld [vmem:[%s318 + $0x140] sm:$0xff]
        %v456 = vld [vmem:[%s318 + $0x148] sm:$0xff]
        %v457 = vld [vmem:[%s318 + $0x150] sm:$0xff]
        %v458 = vld [vmem:[%s318 + $0x158] sm:$0xff]
        %v459 = vld [vmem:[%s318 + $0x160] sm:$0xff]
        %v460 = vld [vmem:[%s318 + $0x168] sm:$0xff]
        %v461 = vld [vmem:[%s318 + $0x170] sm:$0xff]
        %v462 = vld [vmem:[%s318 + $0x178] sm:$0xff]
        %v463 = vld [vmem:[%s318 + $0x180] sm:$0xff]
        %v464 = vld [vmem:[%s318 + $0x188] sm:$0xff]
        %v465 = vld [vmem:[%s318 + $0x190] sm:$0xff]
        %v466 = vld [vmem:[%s318 + $0x198] sm:$0xff]
        %v467 = vld [vmem:[%s318 + $0x1a0] sm:$0xff]
        %v468 = vld [vmem:[%s318 + $0x1a8] sm:$0xff]
        %v469 = vld [vmem:[%s318 + $0x1b0] sm:$0xff]
        %v470 = vld [vmem:[%s318 + $0x1b8] sm:$0xff]
        %v471 = vld [vmem:[%s318 + $0x1c0] sm:$0xff]
        %v472 = vld [vmem:[%s318 + $0x1c8] sm:$0xff]
        %v473 = vld [vmem:[%s318 + $0x1d0] sm:$0xff]
        %v474 = vld [vmem:[%s318 + $0x1d8] sm:$0xff]
        %v475 = vld [vmem:[%s318 + $0x1e0] sm:$0xff]
        %v476 = vld [vmem:[%s318 + $0x1e8] sm:$0xff]
        %v477 = vld [vmem:[%s318 + $0x1f0] sm:$0xff]
        %v478 = vld [vmem:[%s318 + $0x1f8] sm:$0xff]
        %v479 = vld [vmem:[%s318 + $0x200] sm:$0xff]
        %v480 = vld [vmem:[%s318 + $0x208] sm:$0xff]
        %v481 = vld [vmem:[%s318 + $0x210] sm:$0xff]
        %v482 = vld [vmem:[%s318 + $0x218] sm:$0xff]
        %v483 = vld [vmem:[%s318 + $0x220] sm:$0xff]
        %v484 = vld [vmem:[%s318 + $0x228] sm:$0xff]
        %v485 = vld [vmem:[%s318 + $0x230] sm:$0xff]
        %v486 = vld [vmem:[%s318 + $0x238] sm:$0xff]
        %v487 = vld [vmem:[%s318 + $0x240] sm:$0xff]
        %v488 = vld [vmem:[%s318 + $0x248] sm:$0xff]
        %v489 = vld [vmem:[%s318 + $0x250] sm:$0xff]
        %v490 = vld [vmem:[%s318 + $0x258] sm:$0xff]
        %v491 = vld [vmem:[%s318 + $0x260] sm:$0xff]
        %v492 = vld [vmem:[%s318 + $0x268] sm:$0xff]
        %v493 = vld [vmem:[%s318 + $0x270] sm:$0xff]
        %v494 = vld [vmem:[%s318 + $0x278] sm:$0xff]
        %v495 = vld [vmem:[%s318 + $0x280] sm:$0xff]
        %v496 = vld [vmem:[%s318 + $0x288] sm:$0xff]
        %v497 = vld [vmem:[%s318 + $0x290] sm:$0xff]
        %v498 = vld [vmem:[%s318 + $0x298] sm:$0xff]
        %v499 = vld [vmem:[%s318 + $0x2a0] sm:$0xff]
        %v500 = vld [vmem:[%s318 + $0x2a8] sm:$0xff]
        %v501 = vld [vmem:[%s318 + $0x2b0] sm:$0xff]
        %v502 = vld [vmem:[%s318 + $0x2b8] sm:$0xff]
        %v503 = vld [vmem:[%s318 + $0x2c0] sm:$0xff]
        %v504 = vld [vmem:[%s318 + $0x2c8] sm:$0xff]
        %v505 = vld [vmem:[%s318 + $0x2d0] sm:$0xff]
        %v506 = vld [vmem:[%s318 + $0x2d8] sm:$0xff]
        %v507 = vld [vmem:[%s318 + $0x2e0] sm:$0xff]
        %v508 = vld [vmem:[%s318 + $0x2e8] sm:$0xff]
        %v509 = vld [vmem:[%s318 + $0x2f0] sm:$0xff]
        %v510 = vld [vmem:[%s318 + $0x2f8] sm:$0xff]
        %v511 = vld [vmem:[%s318 + $0x300] sm:$0xff]
        %v512 = vld [vmem:[%s318 + $0x308] sm:$0xff]
        %v513 = vld [vmem:[%s318 + $0x310] sm:$0xff]
        %v514 = vld [vmem:[%s318 + $0x318] sm:$0xff]
        %v515 = vld [vmem:[%s318 + $0x320] sm:$0xff]
        %v516 = vld [vmem:[%s318 + $0x328] sm:$0xff]
        %v517 = vld [vmem:[%s318 + $0x330] sm:$0xff]
        %v518 = vld [vmem:[%s318 + $0x338] sm:$0xff]
        %v519 = vld [vmem:[%s318 + $0x340] sm:$0xff]
        %v520 = vld [vmem:[%s318 + $0x348] sm:$0xff]
        %v521 = vld [vmem:[%s318 + $0x350] sm:$0xff]
        %v522 = vld [vmem:[%s318 + $0x358] sm:$0xff]
        %v523 = vld [vmem:[%s318 + $0x360] sm:$0xff]
        %v524 = vld [vmem:[%s318 + $0x368] sm:$0xff]
        %v525 = vld [vmem:[%s318 + $0x370] sm:$0xff]
        %v526 = vld [vmem:[%s318 + $0x378] sm:$0xff]
        %v527 = vld [vmem:[%s318 + $0x380] sm:$0xff]
        %v528 = vld [vmem:[%s318 + $0x388] sm:$0xff]
        %v529 = vld [vmem:[%s318 + $0x390] sm:$0xff]
        %v530 = vld [vmem:[%s318 + $0x398] sm:$0xff]
        %v531 = vld [vmem:[%s318 + $0x3a0] sm:$0xff]
        %v532 = vld [vmem:[%s318 + $0x3a8] sm:$0xff]
        %v533 = vld [vmem:[%s318 + $0x3b0] sm:$0xff]
        %v534 = vld [vmem:[%s318 + $0x3b8] sm:$0xff]
        %v535 = vld [vmem:[%s318 + $0x3c0] sm:$0xff]
        %v536 = vld [vmem:[%s318 + $0x3c8] sm:$0xff]
        %v537 = vld [vmem:[%s318 + $0x3d0] sm:$0xff]
        %v538 = vld [vmem:[%s318 + $0x3d8] sm:$0xff]
        %v539 = vld [vmem:[%s318 + $0x3e0] sm:$0xff]
        %v540 = vld [vmem:[%s318 + $0x3e8] sm:$0xff]
        %v541 = vld [vmem:[%s318 + $0x3f0] sm:$0xff]
        %v542 = vld [vmem:[%s318 + $0x3f8] sm:$0xff]
        %v543 = vld [vmem:[%s318 + $0x400] sm:$0xff]
        %v544 = vld [vmem:[%s318 + $0x408] sm:$0xff]
        %v545 = vld [vmem:[%s318 + $0x410] sm:$0xff]
        %v546 = vld [vmem:[%s318 + $0x418] sm:$0xff]
        %v547 = vld [vmem:[%s318 + $0x420] sm:$0xff]
        %v548 = vld [vmem:[%s318 + $0x428] sm:$0xff]
        %v549 = vld [vmem:[%s318 + $0x430] sm:$0xff]
        %v550 = vld [vmem:[%s318 + $0x438] sm:$0xff]
        %v551 = vld [vmem:[%s318 + $0x440] sm:$0xff]
        %v552 = vld [vmem:[%s318 + $0x448] sm:$0xff]
        %v553 = vld [vmem:[%s318 + $0x450] sm:$0xff]
        %v554 = vld [vmem:[%s318 + $0x458] sm:$0xff]
        %v555 = vld [vmem:[%s318 + $0x460] sm:$0xff]
        %v556 = vld [vmem:[%s318 + $0x468] sm:$0xff]
        %v557 = vld [vmem:[%s318 + $0x470] sm:$0xff]
        %v558 = vld [vmem:[%s318 + $0x478] sm:$0xff]
        %v559 = vld [vmem:[%s318 + $0x480] sm:$0xff]
        %v560 = vld [vmem:[%s318 + $0x488] sm:$0xff]
        %v561 = vld [vmem:[%s318 + $0x490] sm:$0xff]
        %v562 = vld [vmem:[%s318 + $0x498] sm:$0xff]
        %v563 = vld [vmem:[%s318 + $0x4a0] sm:$0xff]
        %v564 = vld [vmem:[%s318 + $0x4a8] sm:$0xff]
        %v565 = vld [vmem:[%s318 + $0x4b0] sm:$0xff]
        %v566 = vld [vmem:[%s318 + $0x4b8] sm:$0xff]
        %v567 = vld [vmem:[%s318 + $0x4c0] sm:$0xff]
        %v568 = vld [vmem:[%s318 + $0x4c8] sm:$0xff]
        %v569 = vld [vmem:[%s318 + $0x4d0] sm:$0xff]
        %v570 = vld [vmem:[%s318 + $0x4d8] sm:$0xff]
        %v571 = vld [vmem:[%s318 + $0x4e0] sm:$0xff]
        %v572 = vld [vmem:[%s318 + $0x4e8] sm:$0xff]
        %v573 = vld [vmem:[%s318 + $0x4f0] sm:$0xff]
        %v574 = vld [vmem:[%s318 + $0x4f8] sm:$0xff]
        %v575 = vld [vmem:[%s318 + $0x500] sm:$0xff]
        %v576 = vld [vmem:[%s318 + $0x508] sm:$0xff]
        %v577 = vld [vmem:[%s318 + $0x510] sm:$0xff]
        %v578 = vld [vmem:[%s318 + $0x518] sm:$0xff]
        %v579 = vld [vmem:[%s318 + $0x520] sm:$0xff]
        %v580 = vld [vmem:[%s318 + $0x528] sm:$0xff]
        %v581 = vld [vmem:[%s318 + $0x530] sm:$0xff]
        %v582 = vld [vmem:[%s318 + $0x538] sm:$0xff]
        %v583 = vld [vmem:[%s318 + $0x540] sm:$0xff]
        %v584 = vld [vmem:[%s318 + $0x548] sm:$0xff]
        %v585 = vld [vmem:[%s318 + $0x550] sm:$0xff]
        %v586 = vld [vmem:[%s318 + $0x558] sm:$0xff]
        %v587 = vld [vmem:[%s318 + $0x560] sm:$0xff]
        %v588 = vld [vmem:[%s318 + $0x568] sm:$0xff]
        %v589 = vld [vmem:[%s318 + $0x570] sm:$0xff]
        %v590 = vld [vmem:[%s318 + $0x578] sm:$0xff]
        %v591 = vld [vmem:[%s318 + $0x580] sm:$0xff]
        %v592 = vld [vmem:[%s318 + $0x588] sm:$0xff]
        %v593 = vld [vmem:[%s318 + $0x590] sm:$0xff]
        %v594 = vld [vmem:[%s318 + $0x598] sm:$0xff]
        %v595 = vld [vmem:[%s318 + $0x5a0] sm:$0xff]
        %v596 = vld [vmem:[%s318 + $0x5a8] sm:$0xff]
        %v597 = vld [vmem:[%s318 + $0x5b0] sm:$0xff]
        %v598 = vld [vmem:[%s318 + $0x5b8] sm:$0xff]
        %v599 = vld [vmem:[%s318 + $0x5c0] sm:$0xff]
        %v600 = vld [vmem:[%s318 + $0x5c8] sm:$0xff]
        %v601 = vld [vmem:[%s318 + $0x5d0] sm:$0xff]
        %v602 = vld [vmem:[%s318 + $0x5d8] sm:$0xff]
        %v603 = vld [vmem:[%s318 + $0x5e0] sm:$0xff]
        %v604 = vld [vmem:[%s318 + $0x5e8] sm:$0xff]
        %v605 = vld [vmem:[%s318 + $0x5f0] sm:$0xff]
        %v606 = vld [vmem:[%s318 + $0x5f8] sm:$0xff]
        %v607 = vld [vmem:[%s318 + $0x600] sm:$0xff]
        %v608 = vld [vmem:[%s318 + $0x608] sm:$0xff]
        %v609 = vld [vmem:[%s318 + $0x610] sm:$0xff]
        %v610 = vld [vmem:[%s318 + $0x618] sm:$0xff]
        %v611 = vld [vmem:[%s318 + $0x620] sm:$0xff]
        %v612 = vld [vmem:[%s318 + $0x628] sm:$0xff]
        %v613 = vld [vmem:[%s318 + $0x630] sm:$0xff]
        %v614 = vld [vmem:[%s318 + $0x638] sm:$0xff]
        %v615 = vld [vmem:[%s318 + $0x640] sm:$0xff]
        %v616 = vld [vmem:[%s318 + $0x648] sm:$0xff]
        %v617 = vld [vmem:[%s318 + $0x650] sm:$0xff]
        %v618 = vld [vmem:[%s318 + $0x658] sm:$0xff]
        %v619 = vld [vmem:[%s318 + $0x660] sm:$0xff]
        %v620 = vld [vmem:[%s318 + $0x668] sm:$0xff]
        %v621 = vld [vmem:[%s318 + $0x670] sm:$0xff]
        %v622 = vld [vmem:[%s318 + $0x678] sm:$0xff]
        %v623 = vld [vmem:[%s318 + $0x680] sm:$0xff]
        %v624 = vld [vmem:[%s318 + $0x688] sm:$0xff]
        %v625 = vld [vmem:[%s318 + $0x690] sm:$0xff]
        %v626 = vld [vmem:[%s318 + $0x698] sm:$0xff]
        %v627 = vld [vmem:[%s318 + $0x6a0] sm:$0xff]
        %v628 = vld [vmem:[%s318 + $0x6a8] sm:$0xff]
        %v629 = vld [vmem:[%s318 + $0x6b0] sm:$0xff]
        %v630 = vld [vmem:[%s318 + $0x6b8] sm:$0xff]
        %v631 = vld [vmem:[%s318 + $0x6c0] sm:$0xff]
        %v632 = vld [vmem:[%s318 + $0x6c8] sm:$0xff]
        %v633 = vld [vmem:[%s318 + $0x6d0] sm:$0xff]
        %v634 = vld [vmem:[%s318 + $0x6d8] sm:$0xff]
        %v635 = vld [vmem:[%s318 + $0x6e0] sm:$0xff]
        %v636 = vld [vmem:[%s318 + $0x6e8] sm:$0xff]
        %v637 = vld [vmem:[%s318 + $0x6f0] sm:$0xff]
        %v638 = vld [vmem:[%s318 + $0x6f8] sm:$0xff]
        %v639 = vld [vmem:[%s318 + $0x700] sm:$0xff]
        %v640 = vld [vmem:[%s318 + $0x708] sm:$0xff]
        %v641 = vld [vmem:[%s318 + $0x710] sm:$0xff]
        %v642 = vld [vmem:[%s318 + $0x718] sm:$0xff]
        %v643 = vld [vmem:[%s318 + $0x720] sm:$0xff]
        %v644 = vld [vmem:[%s318 + $0x728] sm:$0xff]
        %v645 = vld [vmem:[%s318 + $0x730] sm:$0xff]
        %v646 = vld [vmem:[%s318 + $0x738] sm:$0xff]
        %v647 = vld [vmem:[%s318 + $0x740] sm:$0xff]
        %v648 = vld [vmem:[%s318 + $0x748] sm:$0xff]
        %v649 = vld [vmem:[%s318 + $0x750] sm:$0xff]
        %v650 = vld [vmem:[%s318 + $0x758] sm:$0xff]
        %v651 = vld [vmem:[%s318 + $0x760] sm:$0xff]
        %v652 = vld [vmem:[%s318 + $0x768] sm:$0xff]
        %v653 = vld [vmem:[%s318 + $0x770] sm:$0xff]
        %v654 = vld [vmem:[%s318 + $0x778] sm:$0xff]
        %v655 = vld [vmem:[%s318 + $0x780] sm:$0xff]
        %v656 = vld [vmem:[%s318 + $0x788] sm:$0xff]
        %v657 = vld [vmem:[%s318 + $0x790] sm:$0xff]
        %v658 = vld [vmem:[%s318 + $0x798] sm:$0xff]
        %v659 = vld [vmem:[%s318 + $0x7a0] sm:$0xff]
        %v660 = vld [vmem:[%s318 + $0x7a8] sm:$0xff]
        %v661 = vld [vmem:[%s318 + $0x7b0] sm:$0xff]
        %v662 = vld [vmem:[%s318 + $0x7b8] sm:$0xff]
        %v663 = vld [vmem:[%s318 + $0x7c0] sm:$0xff]
        %v664 = vld [vmem:[%s318 + $0x7c8] sm:$0xff]
        %v665 = vld [vmem:[%s318 + $0x7d0] sm:$0xff]
        %v666 = vld [vmem:[%s318 + $0x7d8] sm:$0xff]
        %v667 = vld [vmem:[%s318 + $0x7e0] sm:$0xff]
        %v668 = vld [vmem:[%s318 + $0x7e8] sm:$0xff]
        %v669 = vld [vmem:[%s318 + $0x7f0] sm:$0xff]
        %v670 = vld [vmem:[%s318 + $0x7f8] sm:$0xff]
        %v671 = vld [vmem:[#allocation2] sm:$0xff]
        %v672 = vld [vmem:[#allocation2 + $0x8] sm:$0xff]
        %673 = vmatpush.msra.mxu0 %v445
        %674 = vmatpush.msra.mxu0 %v443
        %675 = vmatpush.msra.mxu0 %v441
        %676 = vmatpush.msra.mxu0 %v439
        %677 = vmatpush.msra.mxu0 %v437
        %678 = vmatpush.msra.mxu0 %v435
        %679 = vmatpush.msra.mxu0 %v433
        %680 = vmatpush.msra.mxu0 %v431
        %681 = vmatpush.msra.mxu0 %v429
        %682 = vmatpush.msra.mxu0 %v427
        %683 = vmatpush.msra.mxu0 %v425
        %684 = vmatpush.msra.mxu0 %v423
        %685 = vmatpush.msra.mxu0 %v421
        %686 = vmatpush.msra.mxu0 %v419
        %687 = vmatpush.msra.mxu0 %v417
        %688 = vmatpush.msra.mxu0 %v415
        %689 = vmatmul.f32.gmra.mxu0 %v407
        %v690 = vpop.f32.mrf.mxu0
        %v691 = vadd.f32 0.0, %v690
        %692 = vdwg.mxu0
        %693 = vmatpush.msra.mxu0 %v477
        %694 = vmatpush.msra.mxu0 %v475
        %695 = vmatpush.msra.mxu0 %v473
        %696 = vmatpush.msra.mxu0 %v471
        %697 = vmatpush.msra.mxu0 %v469
        %698 = vmatpush.msra.mxu0 %v467
        %699 = vmatpush.msra.mxu0 %v465
        %700 = vmatpush.msra.mxu0 %v463
        %701 = vmatpush.msra.mxu0 %v461
        %702 = vmatpush.msra.mxu0 %v459
        %703 = vmatpush.msra.mxu0 %v457
        %704 = vmatpush.msra.mxu0 %v455
        %705 = vmatpush.msra.mxu0 %v453
        %706 = vmatpush.msra.mxu0 %v451
        %707 = vmatpush.msra.mxu0 %v449
        %708 = vmatpush.msra.mxu0 %v447
        %709 = vmatmul.f32.gmra.mxu0 %v408
        %v710 = vpop.f32.mrf.mxu0
        %v711 = vadd.f32 %v691, %v710
        %712 = vdwg.mxu0
        %713 = vmatpush.msra.mxu0 %v509
        %714 = vmatpush.msra.mxu0 %v507
        %715 = vmatpush.msra.mxu0 %v505
        %716 = vmatpush.msra.mxu0 %v503
        %717 = vmatpush.msra.mxu0 %v501
        %718 = vmatpush.msra.mxu0 %v499
        %719 = vmatpush.msra.mxu0 %v497
        %720 = vmatpush.msra.mxu0 %v495
        %721 = vmatpush.msra.mxu0 %v493
        %722 = vmatpush.msra.mxu0 %v491
        %723 = vmatpush.msra.mxu0 %v489
        %724 = vmatpush.msra.mxu0 %v487
        %725 = vmatpush.msra.mxu0 %v485
        %726 = vmatpush.msra.mxu0 %v483
        %727 = vmatpush.msra.mxu0 %v481
        %728 = vmatpush.msra.mxu0 %v479
        %729 = vmatmul.f32.gmra.mxu0 %v409
        %v730 = vpop.f32.mrf.mxu0
        %v731 = vadd.f32 %v711, %v730
        %732 = vdwg.mxu0
        %733 = vmatpush.msra.mxu0 %v541
        %734 = vmatpush.msra.mxu0 %v539
        %735 = vmatpush.msra.mxu0 %v537
        %736 = vmatpush.msra.mxu0 %v535
        %737 = vmatpush.msra.mxu0 %v533
        %738 = vmatpush.msra.mxu0 %v531
        %739 = vmatpush.msra.mxu0 %v529
        %740 = vmatpush.msra.mxu0 %v527
        %741 = vmatpush.msra.mxu0 %v525
        %742 = vmatpush.msra.mxu0 %v523
        %743 = vmatpush.msra.mxu0 %v521
        %744 = vmatpush.msra.mxu0 %v519
        %745 = vmatpush.msra.mxu0 %v517
        %746 = vmatpush.msra.mxu0 %v515
        %747 = vmatpush.msra.mxu0 %v513
        %748 = vmatpush.msra.mxu0 %v511
        %749 = vmatmul.f32.gmra.mxu0 %v410
        %v750 = vpop.f32.mrf.mxu0
        %v751 = vadd.f32 %v731, %v750
        %752 = vdwg.mxu0
        %753 = vmatpush.msra.mxu0 %v573
        %754 = vmatpush.msra.mxu0 %v571
        %755 = vmatpush.msra.mxu0 %v569
        %756 = vmatpush.msra.mxu0 %v567
        %757 = vmatpush.msra.mxu0 %v565
        %758 = vmatpush.msra.mxu0 %v563
        %759 = vmatpush.msra.mxu0 %v561
        %760 = vmatpush.msra.mxu0 %v559
        %761 = vmatpush.msra.mxu0 %v557
        %762 = vmatpush.msra.mxu0 %v555
        %763 = vmatpush.msra.mxu0 %v553
        %764 = vmatpush.msra.mxu0 %v551
        %765 = vmatpush.msra.mxu0 %v549
        %766 = vmatpush.msra.mxu0 %v547
        %767 = vmatpush.msra.mxu0 %v545
        %768 = vmatpush.msra.mxu0 %v543
        %769 = vmatmul.f32.gmra.mxu0 %v411
        %v770 = vpop.f32.mrf.mxu0
        %v771 = vadd.f32 %v751, %v770
        %772 = vdwg.mxu0
        %773 = vmatpush.msra.mxu0 %v605
        %774 = vmatpush.msra.mxu0 %v603
        %775 = vmatpush.msra.mxu0 %v601
        %776 = vmatpush.msra.mxu0 %v599
        %777 = vmatpush.msra.mxu0 %v597
        %778 = vmatpush.msra.mxu0 %v595
        %779 = vmatpush.msra.mxu0 %v593
        %780 = vmatpush.msra.mxu0 %v591
        %781 = vmatpush.msra.mxu0 %v589
        %782 = vmatpush.msra.mxu0 %v587
        %783 = vmatpush.msra.mxu0 %v585
        %784 = vmatpush.msra.mxu0 %v583
        %785 = vmatpush.msra.mxu0 %v581
        %786 = vmatpush.msra.mxu0 %v579
        %787 = vmatpush.msra.mxu0 %v577
        %788 = vmatpush.msra.mxu0 %v575
        %789 = vmatmul.f32.gmra.mxu0 %v412
        %v790 = vpop.f32.mrf.mxu0
        %v791 = vadd.f32 %v771, %v790
        %792 = vdwg.mxu0
        %793 = vmatpush.msra.mxu0 %v637
        %794 = vmatpush.msra.mxu0 %v635
        %795 = vmatpush.msra.mxu0 %v633
        %796 = vmatpush.msra.mxu0 %v631
        %797 = vmatpush.msra.mxu0 %v629
        %798 = vmatpush.msra.mxu0 %v627
        %799 = vmatpush.msra.mxu0 %v625
        %800 = vmatpush.msra.mxu0 %v623
        %801 = vmatpush.msra.mxu0 %v621
        %802 = vmatpush.msra.mxu0 %v619
        %803 = vmatpush.msra.mxu0 %v617
        %804 = vmatpush.msra.mxu0 %v615
        %805 = vmatpush.msra.mxu0 %v613
        %806 = vmatpush.msra.mxu0 %v611
        %807 = vmatpush.msra.mxu0 %v609
        %808 = vmatpush.msra.mxu0 %v607
        %809 = vmatmul.f32.gmra.mxu0 %v413
        %v810 = vpop.f32.mrf.mxu0
        %v811 = vadd.f32 %v791, %v810
        %812 = vdwg.mxu0
        %813 = vmatpush.msra.mxu0 %v669
        %814 = vmatpush.msra.mxu0 %v667
        %815 = vmatpush.msra.mxu0 %v665
        %816 = vmatpush.msra.mxu0 %v663
        %817 = vmatpush.msra.mxu0 %v661
        %818 = vmatpush.msra.mxu0 %v659
        %819 = vmatpush.msra.mxu0 %v657
        %820 = vmatpush.msra.mxu0 %v655
        %821 = vmatpush.msra.mxu0 %v653
        %822 = vmatpush.msra.mxu0 %v651
        %823 = vmatpush.msra.mxu0 %v649
        %824 = vmatpush.msra.mxu0 %v647
        %825 = vmatpush.msra.mxu0 %v645
        %826 = vmatpush.msra.mxu0 %v643
        %827 = vmatpush.msra.mxu0 %v641
        %828 = vmatpush.msra.mxu0 %v639
        %829 = vmatmul.f32.gmra.mxu0 %v414
        %v830 = vpop.f32.mrf.mxu0
        %v831 = vadd.f32 %v811, %v830
        %832 = vdwg.mxu0
        %833 = vmatpush.msra.mxu0 %v446
        %834 = vmatpush.msra.mxu0 %v444
        %835 = vmatpush.msra.mxu0 %v442
        %836 = vmatpush.msra.mxu0 %v440
        %837 = vmatpush.msra.mxu0 %v438
        %838 = vmatpush.msra.mxu0 %v436
        %839 = vmatpush.msra.mxu0 %v434
        %840 = vmatpush.msra.mxu0 %v432
        %841 = vmatpush.msra.mxu0 %v430
        %842 = vmatpush.msra.mxu0 %v428
        %843 = vmatpush.msra.mxu0 %v426
        %844 = vmatpush.msra.mxu0 %v424
        %845 = vmatpush.msra.mxu0 %v422
        %846 = vmatpush.msra.mxu0 %v420
        %847 = vmatpush.msra.mxu0 %v418
        %848 = vmatpush.msra.mxu0 %v416
        %849 = vmatmul.f32.gmra.mxu0 %v407
        %v850 = vpop.f32.mrf.mxu0
        %v851 = vadd.f32 0.0, %v850
        %852 = vdwg.mxu0
        %853 = vmatpush.msra.mxu0 %v478
        %854 = vmatpush.msra.mxu0 %v476
        %855 = vmatpush.msra.mxu0 %v474
        %856 = vmatpush.msra.mxu0 %v472
        %857 = vmatpush.msra.mxu0 %v470
        %858 = vmatpush.msra.mxu0 %v468
        %859 = vmatpush.msra.mxu0 %v466
        %860 = vmatpush.msra.mxu0 %v464
        %861 = vmatpush.msra.mxu0 %v462
        %862 = vmatpush.msra.mxu0 %v460
        %863 = vmatpush.msra.mxu0 %v458
        %864 = vmatpush.msra.mxu0 %v456
        %865 = vmatpush.msra.mxu0 %v454
        %866 = vmatpush.msra.mxu0 %v452
        %867 = vmatpush.msra.mxu0 %v450
        %868 = vmatpush.msra.mxu0 %v448
        %869 = vmatmul.f32.gmra.mxu0 %v408
        %v870 = vpop.f32.mrf.mxu0
        %v871 = vadd.f32 %v851, %v870
        %872 = vdwg.mxu0
        %873 = vmatpush.msra.mxu0 %v510
        %874 = vmatpush.msra.mxu0 %v508
        %875 = vmatpush.msra.mxu0 %v506
        %876 = vmatpush.msra.mxu0 %v504
        %877 = vmatpush.msra.mxu0 %v502
        %878 = vmatpush.msra.mxu0 %v500
        %879 = vmatpush.msra.mxu0 %v498
        %880 = vmatpush.msra.mxu0 %v496
        %881 = vmatpush.msra.mxu0 %v494
        %882 = vmatpush.msra.mxu0 %v492
        %883 = vmatpush.msra.mxu0 %v490
        %884 = vmatpush.msra.mxu0 %v488
        %885 = vmatpush.msra.mxu0 %v486
        %886 = vmatpush.msra.mxu0 %v484
        %887 = vmatpush.msra.mxu0 %v482
        %888 = vmatpush.msra.mxu0 %v480
        %889 = vmatmul.f32.gmra.mxu0 %v409
        %v890 = vpop.f32.mrf.mxu0
        %v891 = vadd.f32 %v871, %v890
        %892 = vdwg.mxu0
        %893 = vmatpush.msra.mxu0 %v542
        %894 = vmatpush.msra.mxu0 %v540
        %895 = vmatpush.msra.mxu0 %v538
        %896 = vmatpush.msra.mxu0 %v536
        %897 = vmatpush.msra.mxu0 %v534
        %898 = vmatpush.msra.mxu0 %v532
        %899 = vmatpush.msra.mxu0 %v530
        %900 = vmatpush.msra.mxu0 %v528
        %901 = vmatpush.msra.mxu0 %v526
        %902 = vmatpush.msra.mxu0 %v524
        %903 = vmatpush.msra.mxu0 %v522
        %904 = vmatpush.msra.mxu0 %v520
        %905 = vmatpush.msra.mxu0 %v518
        %906 = vmatpush.msra.mxu0 %v516
        %907 = vmatpush.msra.mxu0 %v514
        %908 = vmatpush.msra.mxu0 %v512
        %909 = vmatmul.f32.gmra.mxu0 %v410
        %v910 = vpop.f32.mrf.mxu0
        %v911 = vadd.f32 %v891, %v910
        %912 = vdwg.mxu0
        %913 = vmatpush.msra.mxu0 %v574
        %914 = vmatpush.msra.mxu0 %v572
        %915 = vmatpush.msra.mxu0 %v570
        %916 = vmatpush.msra.mxu0 %v568
        %917 = vmatpush.msra.mxu0 %v566
        %918 = vmatpush.msra.mxu0 %v564
        %919 = vmatpush.msra.mxu0 %v562
        %920 = vmatpush.msra.mxu0 %v560
        %921 = vmatpush.msra.mxu0 %v558
        %922 = vmatpush.msra.mxu0 %v556
        %923 = vmatpush.msra.mxu0 %v554
        %924 = vmatpush.msra.mxu0 %v552
        %925 = vmatpush.msra.mxu0 %v550
        %926 = vmatpush.msra.mxu0 %v548
        %927 = vmatpush.msra.mxu0 %v546
        %928 = vmatpush.msra.mxu0 %v544
        %929 = vmatmul.f32.gmra.mxu0 %v411
        %v930 = vpop.f32.mrf.mxu0
        %v931 = vadd.f32 %v911, %v930
        %932 = vdwg.mxu0
        %933 = vmatpush.msra.mxu0 %v606
        %934 = vmatpush.msra.mxu0 %v604
        %935 = vmatpush.msra.mxu0 %v602
        %936 = vmatpush.msra.mxu0 %v600
        %937 = vmatpush.msra.mxu0 %v598
        %938 = vmatpush.msra.mxu0 %v596
        %939 = vmatpush.msra.mxu0 %v594
        %940 = vmatpush.msra.mxu0 %v592
        %941 = vmatpush.msra.mxu0 %v590
        %942 = vmatpush.msra.mxu0 %v588
        %943 = vmatpush.msra.mxu0 %v586
        %944 = vmatpush.msra.mxu0 %v584
        %945 = vmatpush.msra.mxu0 %v582
        %946 = vmatpush.msra.mxu0 %v580
        %947 = vmatpush.msra.mxu0 %v578
        %948 = vmatpush.msra.mxu0 %v576
        %949 = vmatmul.f32.gmra.mxu0 %v412
        %v950 = vpop.f32.mrf.mxu0
        %v951 = vadd.f32 %v931, %v950
        %952 = vdwg.mxu0
        %953 = vmatpush.msra.mxu0 %v638
        %954 = vmatpush.msra.mxu0 %v636
        %955 = vmatpush.msra.mxu0 %v634
        %956 = vmatpush.msra.mxu0 %v632
        %957 = vmatpush.msra.mxu0 %v630
        %958 = vmatpush.msra.mxu0 %v628
        %959 = vmatpush.msra.mxu0 %v626
        %960 = vmatpush.msra.mxu0 %v624
        %961 = vmatpush.msra.mxu0 %v622
        %962 = vmatpush.msra.mxu0 %v620
        %963 = vmatpush.msra.mxu0 %v618
        %964 = vmatpush.msra.mxu0 %v616
        %965 = vmatpush.msra.mxu0 %v614
        %966 = vmatpush.msra.mxu0 %v612
        %967 = vmatpush.msra.mxu0 %v610
        %968 = vmatpush.msra.mxu0 %v608
        %969 = vmatmul.f32.gmra.mxu0 %v413
        %v970 = vpop.f32.mrf.mxu0
        %v971 = vadd.f32 %v951, %v970
        %972 = vdwg.mxu0
        %973 = vmatpush.msra.mxu0 %v670
        %974 = vmatpush.msra.mxu0 %v668
        %975 = vmatpush.msra.mxu0 %v666
        %976 = vmatpush.msra.mxu0 %v664
        %977 = vmatpush.msra.mxu0 %v662
        %978 = vmatpush.msra.mxu0 %v660
        %979 = vmatpush.msra.mxu0 %v658
        %980 = vmatpush.msra.mxu0 %v656
        %981 = vmatpush.msra.mxu0 %v654
        %982 = vmatpush.msra.mxu0 %v652
        %983 = vmatpush.msra.mxu0 %v650
        %984 = vmatpush.msra.mxu0 %v648
        %985 = vmatpush.msra.mxu0 %v646
        %986 = vmatpush.msra.mxu0 %v644
        %987 = vmatpush.msra.mxu0 %v642
        %988 = vmatpush.msra.mxu0 %v640
        %989 = vmatmul.f32.gmra.mxu0 %v414
        %v990 = vpop.f32.mrf.mxu0
        %v991 = vadd.f32 %v971, %v990
        %992 = vdwg.mxu0
        %v993 = vadd.f32 %v671, %v831
        %v994 = vadd.f32 %v672, %v991
        %995 = vst [vmem:[#allocation2] sm:$0xff] %v993
        %996 = vst [vmem:[#allocation2 + $0x8] sm:$0xff] %v994
        // Predicated region
        $region65: #{tpu_custom_call.1} parent=39 // pred_check
          %p997 = pneg %p396
        $region66: #{tpu_custom_call.1} parent=39 // pred_check_branch
          %999 = sbr.rel (%p997) target = $region68
        $region67: #{tpu_custom_call.1} parent=39 // pred_region
          %v1000 = vld [vmem:[#allocation2] sm:$0xff]
          %v1001 = vld [vmem:[#allocation2 + $0x8] sm:$0xff]
          %v1002 = vrot.slane %v1000, 4
          %v1003 = vadd.f32 %v1000, %v1002
          %v1004 = vrot.slane %v1003, 2
          %v1005 = vadd.f32 %v1003, %v1004
          %v1006 = vrot.slane %v1005, 1
          %v1007 = vadd.f32 %v1005, %v1006
          %v1008 = vrot.slane %v1001, 4
          %v1009 = vadd.f32 %v1001, %v1008
          %v1010 = vrot.slane %v1009, 2
          %v1011 = vadd.f32 %v1009, %v1010
          %v1012 = vrot.slane %v1011, 1
          %v1013 = vadd.f32 %v1011, %v1012
          %v1014 = vrcp.pop 8.0
          %v1015 = vmul.f32 8.0, %v1014
          %v1016 = vsub.f32 1.0, %v1015
          %v1017 = vmul.f32 %v1014, %v1016
          %v1018 = vadd.f32 %v1014, %v1017
          %vm1019 = vweird.f32 %v1014
          %v1020 = vsel %vm1019, %v1014, %v1018
          %v1021 = vmul.f32 %v1007, %v1020
          %v1022 = vmul.f32 %v1013, %v1020
          %v1023 = vsub.f32 %v1000, %v1021
          %v1024 = vsub.f32 %v1001, %v1022
          %v1025 = vmul.f32 %v1023, %v1023
          %v1026 = vmul.f32 %v1024, %v1024
          %v1027 = vrot.slane %v1025, 4
          %v1028 = vadd.f32 %v1025, %v1027
          %v1029 = vrot.slane %v1028, 2
          %v1030 = vadd.f32 %v1028, %v1029
          %v1031 = vrot.slane %v1030, 1
          %v1032 = vadd.f32 %v1030, %v1031
          %v1033 = vrot.slane %v1026, 4
          %v1034 = vadd.f32 %v1026, %v1033
          %v1035 = vrot.slane %v1034, 2
          %v1036 = vadd.f32 %v1034, %v1035
          %v1037 = vrot.slane %v1036, 1
          %v1038 = vadd.f32 %v1036, %v1037
          %v1039 = vmul.f32 %v1032, %v1020
          %v1040 = vmul.f32 %v1038, %v1020
          %v1041 = vadd.f32 %v1039, 1e-05
          %v1042 = vadd.f32 %v1040, 1e-05
          %v1043 = vrsqrt.pop %v1041
          %v1044 = vmul.f32 %v1043, %v1041
          %v1045 = vmul.f32 %v1044, %v1043
          %v1046 = vmul.f32 0.5, %v1045
          %v1047 = vsub.f32 1.5, %v1046
          %v1048 = vmul.f32 %v1043, %v1047
          %vm1049 = vweird.f32 %v1041
          %vm1050 = vweird.f32 %v1043
          %vm1051 = vmor %vm1049, %vm1050
          %v1052 = vsel %vm1051, %v1043, %v1048
          %v1053 = vrsqrt.pop %v1042
          %v1054 = vmul.f32 %v1053, %v1042
          %v1055 = vmul.f32 %v1054, %v1053
          %v1056 = vmul.f32 0.5, %v1055
          %v1057 = vsub.f32 1.5, %v1056
          %v1058 = vmul.f32 %v1053, %v1057
          %vm1059 = vweird.f32 %v1042
          %vm1060 = vweird.f32 %v1053
          %vm1061 = vmor %vm1059, %vm1060
          %v1062 = vsel %vm1061, %v1053, %v1058
          %v1063 = vmul.f32 %v1023, %v1052
          %v1064 = vmul.f32 %v1024, %v1062
          %v1065 = vld [vmem:[%s328] sm:$0x3]
          %v1067 = vperm.slane %v1065, 0
          %v1068 = vperm.slane %v1065, 1
          %v1071 = vmul.f32 %v1063, %v1067
          %v1072 = vmul.f32 %v1064, %v1068
          %v1073 = vld [vmem:[%s338] sm:$0x3]
          %v1075 = vperm.slane %v1073, 0
          %v1076 = vperm.slane %v1073, 1
          %v1079 = vadd.f32 %v1071, %v1075
          %v1080 = vadd.f32 %v1072, %v1076
          %v1081 = vmax.f32 %v1079, 0.0
          %v1082 = vmax.f32 %v1080, 0.0
          %v1083 = vld [vmem:[%s348] sm:$0xff]
          %v1084 = vld [vmem:[%s348 + $0x8] sm:$0xff]
          %v1085 = vld [vmem:[%s348 + $0x10] sm:$0xff]
          %v1086 = vld [vmem:[%s348 + $0x18] sm:$0xff]
          %v1087 = vld [vmem:[%s348 + $0x20] sm:$0xff]
          %v1088 = vld [vmem:[%s348 + $0x28] sm:$0xff]
          %v1089 = vld [vmem:[%s348 + $0x30] sm:$0xff]
          %v1090 = vld [vmem:[%s348 + $0x38] sm:$0xff]
          %v1091 = vld [vmem:[%s348 + $0x40] sm:$0xff]
          %v1092 = vld [vmem:[%s348 + $0x48] sm:$0xff]
          %v1093 = vld [vmem:[%s348 + $0x50] sm:$0xff]
          %v1094 = vld [vmem:[%s348 + $0x58] sm:$0xff]
          %v1095 = vld [vmem:[%s348 + $0x60] sm:$0xff]
          %v1096 = vld [vmem:[%s348 + $0x68] sm:$0xff]
          %v1097 = vld [vmem:[%s348 + $0x70] sm:$0xff]
          %v1098 = vld [vmem:[%s348 + $0x78] sm:$0xff]
          %v1099 = vld [vmem:[%s348 + $0x80] sm:$0xff]
          %v1100 = vld [vmem:[%s348 + $0x88] sm:$0xff]
          %v1101 = vld [vmem:[%s348 + $0x90] sm:$0xff]
          %v1102 = vld [vmem:[%s348 + $0x98] sm:$0xff]
          %v1103 = vld [vmem:[%s348 + $0xa0] sm:$0xff]
          %v1104 = vld [vmem:[%s348 + $0xa8] sm:$0xff]
          %v1105 = vld [vmem:[%s348 + $0xb0] sm:$0xff]
          %v1106 = vld [vmem:[%s348 + $0xb8] sm:$0xff]
          %v1107 = vld [vmem:[%s348 + $0xc0] sm:$0xff]
          %v1108 = vld [vmem:[%s348 + $0xc8] sm:$0xff]
          %v1109 = vld [vmem:[%s348 + $0xd0] sm:$0xff]
          %v1110 = vld [vmem:[%s348 + $0xd8] sm:$0xff]
          %v1111 = vld [vmem:[%s348 + $0xe0] sm:$0xff]
          %v1112 = vld [vmem:[%s348 + $0xe8] sm:$0xff]
          %v1113 = vld [vmem:[%s348 + $0xf0] sm:$0xff]
          %v1114 = vld [vmem:[%s348 + $0xf8] sm:$0xff]
          %1115 = vmatpush.msra.mxu0 %v1098
          %1116 = vmatpush.msra.mxu0 %v1097
          %1117 = vmatpush.msra.mxu0 %v1096
          %1118 = vmatpush.msra.mxu0 %v1095
          %1119 = vmatpush.msra.mxu0 %v1094
          %1120 = vmatpush.msra.mxu0 %v1093
          %1121 = vmatpush.msra.mxu0 %v1092
          %1122 = vmatpush.msra.mxu0 %v1091
          %1123 = vmatpush.msra.mxu0 %v1090
          %1124 = vmatpush.msra.mxu0 %v1089
          %1125 = vmatpush.msra.mxu0 %v1088
          %1126 = vmatpush.msra.mxu0 %v1087
          %1127 = vmatpush.msra.mxu0 %v1086
          %1128 = vmatpush.msra.mxu0 %v1085
          %1129 = vmatpush.msra.mxu0 %v1084
          %1130 = vmatpush.msra.mxu0 %v1083
          %1131 = vmatmul.f32.gmra.mxu0 %v1081
          %v1132 = vpop.f32.mrf.mxu0
          %v1133 = vadd.f32 0.0, %v1132
          %1134 = vdwg.mxu0
          %1135 = vmatpush.msra.mxu0 %v1114
          %1136 = vmatpush.msra.mxu0 %v1113
          %1137 = vmatpush.msra.mxu0 %v1112
          %1138 = vmatpush.msra.mxu0 %v1111
          %1139 = vmatpush.msra.mxu0 %v1110
          %1140 = vmatpush.msra.mxu0 %v1109
          %1141 = vmatpush.msra.mxu0 %v1108
          %1142 = vmatpush.msra.mxu0 %v1107
          %1143 = vmatpush.msra.mxu0 %v1106
          %1144 = vmatpush.msra.mxu0 %v1105
          %1145 = vmatpush.msra.mxu0 %v1104
          %1146 = vmatpush.msra.mxu0 %v1103
          %1147 = vmatpush.msra.mxu0 %v1102
          %1148 = vmatpush.msra.mxu0 %v1101
          %1149 = vmatpush.msra.mxu0 %v1100
          %1150 = vmatpush.msra.mxu0 %v1099
          %1151 = vmatmul.f32.gmra.mxu0 %v1082
          %v1152 = vpop.f32.mrf.mxu0
          %v1153 = vadd.f32 %v1133, %v1152
          %1154 = vdwg.mxu0
          %1155 = vst [vmem:[%s390] sm:$0xff] %v1153
        $region68: #{tpu_custom_call.1} parent=39 // pred_fallthru
          _
        %s1156 = sand.u32 %s173, 1
        %s1157 = scalar_lea.sflag [#allocation5], %s1156
        %s1158 = sand.u32 %s173, 1
        %s1159 = smul.addr %s1158, 8
        %s1160 = scalar_lea.vmem [#allocation12], %s1159
        // Predicated region
        $region69: #{tpu_custom_call.1} parent=39 // pred_check
          %p1161 = pneg %p183
        $region70: #{tpu_custom_call.1} parent=39 // pred_check_branch
          %1163 = sbr.rel (%p1161) target = $region72
        $region71: #{tpu_custom_call.1} parent=39 // pred_region
          %1165 = vsyncadd %s1157, 0
          %s1166 = smul.addr %s30, 8
          %s1167 = scalar_lea.hbm %s5, %s1166
          %s1169 = sshll.u32 %s1160, 4
          %s1170 = int_to_ptr.vmem [resolvable:$true] %s1169
          %s1171 = sshll.u32 %s1167, 4
          %s1172 = int_to_ptr.hbm [resolvable:$true] %s1171
          %1174 = dma.vmem_to_hbm [thread:$0]  %s1170, 128, %s1172, %s1157
        $region72: #{tpu_custom_call.1} parent=39 // pred_fallthru
          _
      $region40: #{tpu_custom_call.1} parent=5 // pred_fallthru
        _
      %p1175 = scmp.le.s32.totalorder 2, %s21
      // Predicated region
      $region73: #{tpu_custom_call.1} parent=5 // pred_check
        %p1176 = pneg %p1175
      $region74: #{tpu_custom_call.1} parent=5 // pred_check_branch
        %1178 = sbr.rel (%p1176) target = $region76
      $region75: #{tpu_custom_call.1} parent=5 // pred_region
        %s1179 = ssub.s32 %s21, 2
        // Predicated region
        $region77: #{tpu_custom_call.1} parent=75 // pred_check
          %p1180 = pneg %p189
        $region78: #{tpu_custom_call.1} parent=75 // pred_check_branch
          %1182 = sbr.rel (%p1180) target = $region80
        $region79: #{tpu_custom_call.1} parent=75 // pred_region
          %s1183 = sand.u32 %s174, 1
          %s1184 = scalar_lea.sflag [#allocation5], %s1183
          %s1185 = sand.u32 %s174, 1
          %s1186 = smul.addr %s1185, 8
          %s1187 = scalar_lea.vmem [#allocation12], %s1186
          %1189 = dma.done %s1184, 128
        $region80: #{tpu_custom_call.1} parent=75 // pred_fallthru
          _
      $region76: #{tpu_custom_call.1} parent=5 // pred_fallthru
        _
    $region6: #{tpu_custom_call.1} parent=1 // loop_footer
      %s25 = sadd.s32 1, %s21
    $region7: #{tpu_custom_call.1} parent=1 // loop_footer_branch
      %20 = sbr.rel target = $region3
    $region8: #{tpu_custom_call.1} parent=1 // loop_exit
      _
    %1190 = vsyncpa [#allocation4], 1
    %s1191 = scalar_lea.sflag [#allocation4], 1
    %1192 = vsyncpa %s1191, 1
    %1193 = vsyncpa [#allocation7], 1
    %s1194 = scalar_lea.sflag [#allocation7], 1
    %1195 = vsyncpa %s1194, 1
    %1196 = vsyncpa [#allocation10], 1
    %s1197 = scalar_lea.sflag [#allocation10], 1
    %1198 = vsyncpa %s1197, 1
    %1199 = vsyncpa [#allocation5], 1
    %s1200 = scalar_lea.sflag [#allocation5], 1
    %1201 = vsyncpa %s1200, 1

</llo_original>
